<compile_context>
chip_gen: v5e
topology: v5e:2x2
jax: 0.10.0
libtpu: 0.0.40
codegen_flags: <defaults>
</compile_context>

<pallas_src>
import jax
import jax.numpy as jnp
from jax import lax
from jax.experimental import pallas as pl
from jax.experimental.pallas import tpu as pltpu

EPS = 1e-5


# --------------------------------------------------------------------------------------
# In-kernel helpers
# --------------------------------------------------------------------------------------
def _conv3_matmul(x, w_flat):
    """Conv1d(kernel=3, stride=1, padding=1) as a single MXU matmul.

    x: (L, C) f32 value; w_flat: (3*C, C_out) with rows ordered [tap0; tap1; tap2].
    Returns (L, C_out) f32.
    """
    L, C = x.shape
    zrow = jnp.zeros((1, C), x.dtype)
    x_prev = jnp.concatenate([zrow, x[:L - 1, :]], axis=0)   # tap 0 reads input at l-1
    x_next = jnp.concatenate([x[1:, :], zrow], axis=0)       # tap 2 reads input at l+1
    xcat = jnp.concatenate([x_prev, x, x_next], axis=1)      # (L, 3*C) lane-axis concat
    # TODO(synk): for production channel counts on v6e/v7x, feed bf16 operands here
    # (keep preferred_element_type=f32); kept f32 so the tight f32 reference check passes.
    return jnp.dot(xcat, w_flat, preferred_element_type=jnp.float32)


def _partial_stats(y):
    """(rows, C) f32 -> (2, C) [sum, sum_of_squares] per channel."""
    s = jnp.sum(y, axis=0, keepdims=True)
    ss = jnp.sum(y * y, axis=0, keepdims=True)
    return jnp.concatenate([s, ss], axis=0)


# --------------------------------------------------------------------------------------
# Kernels (batch dim squeezed away by BlockSpec -> all refs are 2-D, lane-dense last dim)
# --------------------------------------------------------------------------------------
def conv1_stats_kernel(x_ref, w1_ref, y1_ref, s1_ref):
    # x_ref: (L, C_in), w1_ref: (3*C_in, C_out), y1_ref: (L, C_out), s1_ref: (2, C_out)
    y = _conv3_matmul(x_ref[...].astype(jnp.float32), w1_ref[...])
    y1_ref[...] = y.astype(y1_ref.dtype)
    s1_ref[...] = _partial_stats(y)


def bn1_relu_conv2_stats_kernel(y1_ref, sc1_ref, sh1_ref, w2_ref, y2_ref, s2_ref):
    # Fused BN1 affine (scale/shift precomputed from global stats) + ReLU + conv2 + stats.
    h = jnp.maximum(y1_ref[...].astype(jnp.float32) * sc1_ref[...] + sh1_ref[...], 0.0)
    y = _conv3_matmul(h, w2_ref[...])
    y2_ref[...] = y.astype(y2_ref.dtype)
    s2_ref[...] = _partial_stats(y)


def bn2_maxpool_kernel(y2_ref, sc2_ref, sh2_ref, o_ref):
    # Fused BN2 affine + MaxPool1d(kernel=3, stride=3) via strided sublane reads.
    L_out = o_ref.shape[0]
    sc = sc2_ref[...]
    sh = sh2_ref[...]
    m0 = y2_ref[pl.ds(0, L_out, stride=3), :].astype(jnp.float32) * sc + sh
    m1 = y2_ref[pl.ds(1, L_out, stride=3), :].astype(jnp.float32) * sc + sh
    m2 = y2_ref[pl.ds(2, L_out, stride=3), :].astype(jnp.float32) * sc + sh
    o_ref[...] = jnp.maximum(jnp.maximum(m0, m1), m2).astype(o_ref.dtype)


# --------------------------------------------------------------------------------------
# Wrapper
# --------------------------------------------------------------------------------------
def _fused_scale_shift(partial_stats, gamma, beta, count):
    """Collapse training-mode BN into y*scale + shift (per channel)."""
    tot = jnp.sum(partial_stats, axis=0)          # (2, C)
    mean = tot[0] / count
    var = tot[1] / count - mean * mean            # biased variance (PyTorch training mode)
    scale = gamma * lax.rsqrt(var + EPS)
    shift = beta - mean * scale
    return scale.reshape(1, -1), shift.reshape(1, -1)


def conv1d_block(x_ncl, params):
    """x_ncl: (N, C_in, L) like PyTorch. Returns (N, C_out, L // 3)."""
    N, C_in, L = x_ncl.shape
    C_out = params["w1"].shape[0]
    L_out = L // 3

    # TODO(synk): accept/emit channels-last directly to drop these HBM round-trip transposes.
    x_nlc = jnp.transpose(x_ncl, (0, 2, 1)).astype(jnp.float32)            # (N, L, C_in)
    w1 = jnp.transpose(params["w1"], (2, 1, 0)).reshape(3 * C_in, C_out)   # rows = k*C + c
    w2 = jnp.transpose(params["w2"], (2, 1, 0)).reshape(3 * C_out, C_out)
    # Conv biases b1/b2 are cancelled exactly by training-mode BN mean subtraction -> unused.

    cparams = pltpu.CompilerParams(
        dimension_semantics=("parallel",),       # batch axis shards across TCs on v7x
        vmem_limit_bytes=32 * 1024 * 1024,       # explicit budget; fits v5e/v6e/v7x
    )
    full2d = lambda a: pl.BlockSpec(a.shape, lambda i: (0, 0))   # small whole-array operand
    row_blk = lambda d: pl.BlockSpec((None, L, d), lambda i: (i, 0, 0))    # one batch row
    stat_blk = lambda d: pl.BlockSpec((None, 2, d), lambda i: (i, 0, 0))   # per-row stats

    # ---- Pass 1: conv1 + per-row BN1 partial stats -------------------------------------
    y1, s1 = pl.pallas_call(
        conv1_stats_kernel,
        out_shape=(jax.ShapeDtypeStruct((N, L, C_out), jnp.float32),
                   jax.ShapeDtypeStruct((N, 2, C_out), jnp.float32)),
        grid=(N,),
        in_specs=[row_blk(C_in), full2d(w1)],
        out_specs=(row_blk(C_out), stat_blk(C_out)),
        compiler_params=cparams,
    )(x_nlc, w1)
    sc1, sh1 = _fused_scale_shift(s1, params["g1"], params["be1"], N * L)

    # ---- Pass 2: BN1 affine + ReLU + conv2 + per-row BN2 partial stats ------------------
    y2, s2 = pl.pallas_call(
        bn1_relu_conv2_stats_kernel,
        out_shape=(jax.ShapeDtypeStruct((N, L, C_out), jnp.float32),
                   jax.ShapeDtypeStruct((N, 2, C_out), jnp.float32)),
        grid=(N,),
        in_specs=[row_blk(C_out), full2d(sc1), full2d(sh1), full2d(w2)],
        out_specs=(row_blk(C_out), stat_blk(C_out)),
        compiler_params=cparams,
    )(y1, sc1, sh1, w2)
    sc2, sh2 = _fused_scale_shift(s2, params["g2"], params["be2"], N * L)

    # ---- Pass 3: BN2 affine + MaxPool1d(3) ----------------------------------------------
    out_nlc = pl.pallas_call(
        bn2_maxpool_kernel,
        out_shape=jax.ShapeDtypeStruct((N, L_out, C_out), jnp.float32),
        grid=(N,),
        in_specs=[row_blk(C_out), full2d(sc2), full2d(sh2)],
        out_specs=pl.BlockSpec((None, L_out, C_out), lambda i: (i, 0, 0)),
        compiler_params=cparams,
    )(y2, sc2, sh2)

    return jnp.transpose(out_nlc, (0, 2, 1))                               # back to NCL


# --------------------------------------------------------------------------------------
# Pure-JAX reference (PyTorch semantics, including the conv biases) for verification
# --------------------------------------------------------------------------------------
def reference(x_ncl, params):
    def conv1d(x, w, b):  # x (N,C,L), w (O,C,3), b (O,)
        L = x.shape[2]
        xp = jnp.pad(x, ((0, 0), (0, 0), (1, 1)))
        y = sum(jnp.einsum('ncl,oc->nol', xp[:, :, k:k + L], w[:, :, k]) for k in range(3))
        return y + b[None, :, None]

    def bn(y, g, b):
        mean = jnp.mean(y, axis=(0, 2), keepdims=True)
        var = jnp.mean((y - mean) ** 2, axis=(0, 2), keepdims=True)
        return (y - mean) * lax.rsqrt(var + EPS) * g[None, :, None] + b[None, :, None]

    y = jnp.maximum(bn(conv1d(x_ncl, params["w1"], params["b1"]), params["g1"], params["be1"]), 0.0)
    y = bn(conv1d(y, params["w2"], params["b2"]), params["g2"], params["be2"])
    N, C, L = y.shape
    L_out = L // 3
    return jnp.max(y[:, :, :3 * L_out].reshape(N, C, L_out, 3), axis=-1)


if __name__ == "__main__":
    key = jax.random.PRNGKey(0)
    N, C_in, C_out, L = 2, 4, 8, 16
    k1, k2, k3, k4, k5 = jax.random.split(key, 5)

    params = dict(
        w1=jax.random.normal(k1, (C_out, C_in, 3), jnp.float32) * 0.3,
        b1=jax.random.normal(k2, (C_out,), jnp.float32) * 0.1,
        g1=jnp.ones((C_out,), jnp.float32),     # BN affine default (weight=1)
        be1=jnp.zeros((C_out,), jnp.float32),   # BN affine default (bias=0)
        w2=jax.random.normal(k3, (C_out, C_out, 3), jnp.float32) * 0.3,
        b2=jax.random.normal(k4, (C_out,), jnp.float32) * 0.1,
        g2=jnp.ones((C_out,), jnp.float32),
        be2=jnp.zeros((C_out,), jnp.float32),
    )
    x = jax.random.normal(k5, (N, C_in, L), jnp.float32)

    out = jax.block_until_ready(conv1d_block(x, params))
    ref = reference(x, params)

    assert out.shape == (N, C_out, L // 3), out.shape
    assert jnp.allclose(out, ref, rtol=1e-4, atol=2e-4), float(jnp.max(jnp.abs(out - ref)))
    print("KERNEL_OK")
</pallas_src>

<mosaic_0001>
module attributes {stable_mosaic.version = 11 : i64} {
  func.func @conv1_stats_kernel(%arg0: i32, %arg1: memref<1x16x4xf32, #tpu.memory_space<vmem>>, %arg2: memref<12x8xf32, #tpu.memory_space<vmem>>, %arg3: memref<1x16x8xf32, #tpu.memory_space<vmem>>, %arg4: memref<1x2x8xf32, #tpu.memory_space<vmem>>) attributes {dimension_semantics = [#tpu.dimension_semantics<parallel>], iteration_bounds = array<i64: 2>, scalar_prefetch = 0 : i64, scratch_operands = 0 : i64, tpu.core_type = #tpu.core_type<tc>, window_params = [{transform_indices = @transform_0, window_bounds = array<i64: 1, 16, 4>}, {pipeline_mode = #tpu.pipeline_mode<synchronous>, transform_indices = @transform_1, window_bounds = array<i64: 12, 8>}, {transform_indices = @transform_2, window_bounds = array<i64: 1, 16, 8>}, {transform_indices = @transform_3, window_bounds = array<i64: 1, 2, 8>}]} {
    %c0 = arith.constant 0 : index
    %c0_0 = arith.constant 0 : index
    %c0_1 = arith.constant 0 : index
    %0 = vector.load %arg1[%c0, %c0_0, %c0_1] : memref<1x16x4xf32, #tpu.memory_space<vmem>>, vector<1x16x4xf32>
    %1 = vector.shape_cast %0 : vector<1x16x4xf32> to vector<16x4xf32>
    %c0_2 = arith.constant 0 : index
    %c0_3 = arith.constant 0 : index
    %2 = vector.load %arg2[%c0_2, %c0_3] : memref<12x8xf32, #tpu.memory_space<vmem>>, vector<12x8xf32>
    %cst = arith.constant 0.000000e+00 : f32
    %3 = vector.broadcast %cst : f32 to vector<1x4xf32>
    %4 = vector.extract_strided_slice %1 {offsets = [0, 0], sizes = [15, 4], strides = [1, 1]} : vector<16x4xf32> to vector<15x4xf32>
    %5 = tpu.concatenate %3, %4 in 0 : vector<1x4xf32>, vector<15x4xf32> -> vector<16x4xf32>
    %6 = vector.extract_strided_slice %1 {offsets = [1, 0], sizes = [15, 4], strides = [1, 1]} : vector<16x4xf32> to vector<15x4xf32>
    %7 = tpu.concatenate %6, %3 in 0 : vector<15x4xf32>, vector<1x4xf32> -> vector<16x4xf32>
    %8 = tpu.concatenate %5, %1, %7 in 1 : vector<16x4xf32>, vector<16x4xf32>, vector<16x4xf32> -> vector<16x12xf32>
    %cst_4 = arith.constant dense<0.000000e+00> : vector<16x8xf32>
    %9 = tpu.matmul %8, %2, %cst_4 {dimension_numbers = #tpu.dot_dimension_numbers<[1], [0], [0], [1], [0, 0, 1, 1], [], []>} : vector<16x12xf32>, vector<12x8xf32>, vector<16x8xf32> -> vector<16x8xf32>
    %c0_5 = arith.constant 0 : index
    %c0_6 = arith.constant 0 : index
    %c0_7 = arith.constant 0 : index
    %10 = vector.load %arg3[%c0_5, %c0_6, %c0_7] : memref<1x16x8xf32, #tpu.memory_space<vmem>>, vector<1x16x8xf32>
    %11 = vector.shape_cast %10 : vector<1x16x8xf32> to vector<16x8xf32>
    %12 = vector.shape_cast %9 : vector<16x8xf32> to vector<1x16x8xf32>
    tpu.vector_store %arg3[%c0_5, %c0_6, %c0_7], %12 {strides = array<i32>} : memref<1x16x8xf32, #tpu.memory_space<vmem>>, vector<1x16x8xf32>,
    %cst_8 = arith.constant dense<0.000000e+00> : vector<8xf32>
    %13 = vector.multi_reduction <add>, %9, %cst_8 [0] : vector<16x8xf32> to vector<8xf32>
    %14 = vector.shape_cast %13 : vector<8xf32> to vector<1x8xf32>
    %15 = arith.mulf %9, %9 : vector<16x8xf32>
    %cst_9 = arith.constant dense<0.000000e+00> : vector<8xf32>
    %16 = vector.multi_reduction <add>, %15, %cst_9 [0] : vector<16x8xf32> to vector<8xf32>
    %17 = vector.shape_cast %16 : vector<8xf32> to vector<1x8xf32>
    %18 = tpu.concatenate %14, %17 in 0 : vector<1x8xf32>, vector<1x8xf32> -> vector<2x8xf32>
    %c0_10 = arith.constant 0 : index
    %c0_11 = arith.constant 0 : index
    %c0_12 = arith.constant 0 : index
    %19 = vector.load %arg4[%c0_10, %c0_11, %c0_12] : memref<1x2x8xf32, #tpu.memory_space<vmem>>, vector<1x2x8xf32>
    %20 = vector.shape_cast %19 : vector<1x2x8xf32> to vector<2x8xf32>
    %21 = vector.shape_cast %18 : vector<2x8xf32> to vector<1x2x8xf32>
    tpu.vector_store %arg4[%c0_10, %c0_11, %c0_12], %21 {strides = array<i32>} : memref<1x2x8xf32, #tpu.memory_space<vmem>>, vector<1x2x8xf32>,
    return
  }
  func.func @transform_0(%arg0: i32) -> (i32, i32, i32) {
    %c0_i32 = arith.constant 0 : i32
    %c0_i32_0 = arith.constant 0 : i32
    %c0_i32_1 = arith.constant 0 : i32
    return %arg0, %c0_i32, %c0_i32_0 : i32, i32, i32
  }
  func.func @transform_1(%arg0: i32) -> (i32, i32) {
    %c0_i32 = arith.constant 0 : i32
    %c0_i32_0 = arith.constant 0 : i32
    %c0_i32_1 = arith.constant 0 : i32
    return %c0_i32, %c0_i32_0 : i32, i32
  }
  func.func @transform_2(%arg0: i32) -> (i32, i32, i32) {
    %c0_i32 = arith.constant 0 : i32
    %c0_i32_0 = arith.constant 0 : i32
    %c0_i32_1 = arith.constant 0 : i32
    return %arg0, %c0_i32, %c0_i32_0 : i32, i32, i32
  }
  func.func @transform_3(%arg0: i32) -> (i32, i32, i32) {
    %c0_i32 = arith.constant 0 : i32
    %c0_i32_0 = arith.constant 0 : i32
    %c0_i32_1 = arith.constant 0 : i32
    return %arg0, %c0_i32, %c0_i32_0 : i32, i32, i32
  }
}

</mosaic_0001>

<llo_original>
// kernel: tpu_custom_call.1
$region0: #{tpu_custom_call.1}
  #allocation0 [shape = 'u32[]', space=smem, size = 0x4, offset = 0x4, fixed_abs, tag = 'smem constant byte address 0x4 - core index']
  #allocation1 [shape = 'u32[72,128]{1,0:T(1,128)}', space=vmem, size = 0x9000, scoped, tag = 'internal scratch']
  %s0 = inlined_call_operand.vmem [shape: f32[2,16,4], index: 0, kind: input, shape index: {}]
  %s1 = inlined_call_operand.vmem [shape: f32[12,8], index: 1, kind: input, shape index: {}]
  %s2 = inlined_call_operand.vmem [shape: f32[2,16,8], index: 2, kind: output, shape index: {0}]
  %s3 = inlined_call_operand.hbm [shape: f32[2,2,8], index: 3, kind: output, shape index: {1}]
  %4 = xla_tuple %s2, %s3
  %s5 = sld [smem:[#allocation0]]
  $region49: #{tpu_custom_call.1} parent=0
    _
  %s7 = ssub.s32 1, %s5
  %s8 = scalar_select 0, %s7, %s5
  $region1: #{tpu_custom_call.1} parent=0
    #allocation2 [shape = 'u8[2048]{0}', space=vmem, size = 0x800, scoped, tag = 'output window, operand 1']
    #allocation3 [shape = 's32[2]{0}', space=sflag, size = 0x8, scoped, tag = 'scoped memory for tpu_custom_call.1']
    %9 = vsyncpa [#allocation3], 0
    %s10 = scalar_lea.sflag [#allocation3], 1
    %11 = vsyncpa %s10, 0
    loop: start=0, step=1, limit=4
    $region2: #{tpu_custom_call.1} parent=1 // loop_pre_header
      _
    $region3: #{tpu_custom_call.1} parent=1 // loop_header
      %s13 = sphi 0, %s17
      %p14 = scmp.ge.s32.totalorder %s13, 4
      %s23 = sphi 0, %s25
      %s26 = sphi 0, %s23
      %s27 = sphi 0, %s26
      %s43 = sphi 0, %s27
      %s47 = sphi 0, %s47
      %s49 = sphi 0, %s47
      %s50 = sphi 0, %s49
      %s64 = sphi 0, %s50
      %s70 = sphi 0, %s72
      %s73 = sphi 0, %s70
      %s74 = sphi 0, %s73
      %s90 = sphi 0, %s74
      %s96 = sphi 0, %s98
      %s99 = sphi 0, %s96
      %s100 = sphi 0, %s99
      %s116 = sphi 0, %s100
    $region4: #{tpu_custom_call.1} parent=1 // loop_header_branch
      %16 = sbr.rel (%p14) target = $region8
    $region5: #{tpu_custom_call.1} parent=1 // loop_body
      %s18 = ssub.s32 %s13, 1
      %s19 = ssub.s32 %s13, 2
      %s20 = sadd.s32 %s13, 1
      %s21 = ssub.s32 %s13, %s20
      %p22 = scmp.eq.s32.totalorder %s21, 0
      %s24 = sadd.s32 %s23, 1
      %s25 = scalar_select %p22, %s23, %s24
      %p28 = pneg %p22
      %p29 = scmp.eq.s32.totalorder %s13, 1
      %p30 = por %p28, %p29
      %p31 = scmp.ne.s32.totalorder %s23, %s26
      %p32 = scmp.eq.s32.totalorder %s13, 0
      %p33 = por %p31, %p32
      %p34 = scmp.ne.s32.totalorder %s23, %s26
      %p35 = scmp.eq.s32.totalorder %s18, 1
      %p36 = por %p34, %p35
      %p37 = scmp.ne.s32.totalorder %s26, %s27
      %p38 = scmp.eq.s32.totalorder %s18, 0
      %p39 = por %p37, %p38
      %p40 = scmp.ne.s32.totalorder %s26, %s27
      %p41 = scmp.eq.s32.totalorder %s19, 1
      %p42 = por %p40, %p41
      %p44 = scmp.ne.s32.totalorder %s27, %s43
      %p45 = scmp.eq.s32.totalorder %s19, 0
      %p46 = por %p44, %p45
      %s48 = sadd.s32 %s47, 1
      %p51 = scmp.eq.s32.totalorder %s13, 1
      %p52 = scmp.ne.s32.totalorder %s47, %s49
      %p53 = scmp.eq.s32.totalorder %s13, 0
      %p54 = por %p52, %p53
      %p55 = scmp.ne.s32.totalorder %s47, %s49
      %p56 = scmp.eq.s32.totalorder %s18, 1
      %p57 = por %p55, %p56
      %p58 = scmp.ne.s32.totalorder %s49, %s50
      %p59 = scmp.eq.s32.totalorder %s18, 0
      %p60 = por %p58, %p59
      %p61 = scmp.ne.s32.totalorder %s49, %s50
      %p62 = scmp.eq.s32.totalorder %s19, 1
      %p63 = por %p61, %p62
      %p65 = scmp.ne.s32.totalorder %s50, %s64
      %p66 = scmp.eq.s32.totalorder %s19, 0
      %p67 = por %p65, %p66
      %s68 = ssub.s32 %s13, %s20
      %p69 = scmp.eq.s32.totalorder %s68, 0
      %s71 = sadd.s32 %s70, 1
      %s72 = scalar_select %p69, %s70, %s71
      %p75 = pneg %p69
      %p76 = scmp.eq.s32.totalorder %s13, 1
      %p77 = por %p75, %p76
      %p78 = scmp.ne.s32.totalorder %s70, %s73
      %p79 = scmp.eq.s32.totalorder %s13, 0
      %p80 = por %p78, %p79
      %p81 = scmp.ne.s32.totalorder %s70, %s73
      %p82 = scmp.eq.s32.totalorder %s18, 1
      %p83 = por %p81, %p82
      %p84 = scmp.ne.s32.totalorder %s73, %s74
      %p85 = scmp.eq.s32.totalorder %s18, 0
      %p86 = por %p84, %p85
      %p87 = scmp.ne.s32.totalorder %s73, %s74
      %p88 = scmp.eq.s32.totalorder %s19, 1
      %p89 = por %p87, %p88
      %p91 = scmp.ne.s32.totalorder %s74, %s90
      %p92 = scmp.eq.s32.totalorder %s19, 0
      %p93 = por %p91, %p92
      %s94 = ssub.s32 %s13, %s20
      %p95 = scmp.eq.s32.totalorder %s94, 0
      %s97 = sadd.s32 %s96, 1
      %s98 = scalar_select %p95, %s96, %s97
      %p101 = pneg %p95
      %p102 = scmp.eq.s32.totalorder %s13, 1
      %p103 = por %p101, %p102
      %p104 = scmp.ne.s32.totalorder %s96, %s99
      %p105 = scmp.eq.s32.totalorder %s13, 0
      %p106 = por %p104, %p105
      %p107 = scmp.ne.s32.totalorder %s96, %s99
      %p108 = scmp.eq.s32.totalorder %s18, 1
      %p109 = por %p107, %p108
      %p110 = scmp.ne.s32.totalorder %s99, %s100
      %p111 = scmp.eq.s32.totalorder %s18, 0
      %p112 = por %p110, %p111
      %p113 = scmp.ne.s32.totalorder %s99, %s100
      %p114 = scmp.eq.s32.totalorder %s19, 1
      %p115 = por %p113, %p114
      %p117 = scmp.ne.s32.totalorder %s100, %s116
      %p118 = scmp.eq.s32.totalorder %s19, 0
      %p119 = por %p117, %p118
      %p120 = scmp.le.s32.totalorder 1, %s13
      %p121 = scmp.lt.s32.totalorder %s13, 3
      %p122 = pnand %p120, %p121
      %p123 = pneg %p122
      // Predicated region
      $region9: #{tpu_custom_call.1} parent=5 // pred_check
        _
      $region10: #{tpu_custom_call.1} parent=5 // pred_check_branch
        %125 = sbr.rel (%p122) target = $region12
      $region11: #{tpu_custom_call.1} parent=5 // pred_region
        %s126 = ssub.s32 %s13, 1
        // Predicated region
        $region13: #{tpu_custom_call.1} parent=11 // pred_check
          %p127 = pneg %p60
        $region14: #{tpu_custom_call.1} parent=11 // pred_check_branch
          %129 = sbr.rel (%p127) target = $region16
        $region15: #{tpu_custom_call.1} parent=11 // pred_region
          _
        $region16: #{tpu_custom_call.1} parent=11 // pred_fallthru
          _
      $region12: #{tpu_custom_call.1} parent=5 // pred_fallthru
        _
      %p130 = scmp.lt.s32.totalorder %s13, 2
      // Predicated region
      $region17: #{tpu_custom_call.1} parent=5 // pred_check
        %p131 = pneg %p130
      $region18: #{tpu_custom_call.1} parent=5 // pred_check_branch
        %133 = sbr.rel (%p131) target = $region20
      $region19: #{tpu_custom_call.1} parent=5 // pred_region
        // Predicated region
        $region21: #{tpu_custom_call.1} parent=19 // pred_check
          %p134 = pneg %p33
        $region22: #{tpu_custom_call.1} parent=19 // pred_check_branch
          %136 = sbr.rel (%p134) target = $region24
        $region23: #{tpu_custom_call.1} parent=19 // pred_region
          %p137 = scmp.lt.s32.totalorder %s13, 1
          %s138 = scalar_select %p137, %s13, 1
          %s139 = smul.addr %s138, 2
          %s140 = smul.addr %s139, 8
          %s141 = scalar_lea.vmem %s0, %s140
        $region24: #{tpu_custom_call.1} parent=19 // pred_fallthru
          _
      $region20: #{tpu_custom_call.1} parent=5 // pred_fallthru
        _
      %p142 = scmp.le.s32.totalorder 1, %s13
      %p143 = scmp.lt.s32.totalorder %s13, 3
      %p144 = pnand %p142, %p143
      %p145 = pneg %p144
      // Predicated region
      $region25: #{tpu_custom_call.1} parent=5 // pred_check
        _
      $region26: #{tpu_custom_call.1} parent=5 // pred_check_branch
        %147 = sbr.rel (%p144) target = $region28
      $region27: #{tpu_custom_call.1} parent=5 // pred_region
        %s148 = ssub.s32 %s13, 1
        %p149 = scmp.lt.s32.totalorder %s18, 1
        %s150 = scalar_select %p149, %s18, 1
        %s151 = smul.addr %s150, 2
        %s152 = smul.addr %s151, 8
        %s153 = scalar_lea.vmem %s0, %s152
        %p154 = pneg %p39
        %p155 = pneg %p36
        %p156 = pneg %p60
        %p157 = pneg %p57
        %p158 = pneg %p86
        %p159 = pneg %p83
        %p160 = scmp.lt.s32.totalorder %s18, 1
        %s161 = scalar_select %p160, %s18, 1
        %s162 = smul.addr %s161, 2
        %s163 = smul.addr %s162, 8
        %s164 = scalar_lea.vmem %s2, %s163
        %p165 = pneg %p112
        %p166 = pneg %p109
        %s167 = sand.u32 %s99, 1
        %s168 = scalar_lea.sflag [#allocation3], %s167
        %s169 = sand.u32 %s99, 1
        %s170 = smul.addr %s169, 2
        %s171 = scalar_lea.vmem [#allocation2], %s170
        %p172 = scmp.lt.s32.totalorder %s18, 1
        %s173 = scalar_select %p172, %s18, 1
        %s174 = smul.addr %s173, 2
        %s175 = smul.addr %s174, 8
        %s176 = scalar_lea.vmem %s0, %s175
        %p177 = scmp.lt.s32.totalorder %s18, 1
        %s178 = scalar_select %p177, %s18, 1
        %s179 = smul.addr %s178, 2
        %s180 = smul.addr %s179, 8
        %s181 = scalar_lea.vmem %s2, %s180
        %v182 = vld [vmem:[%s176] sm:$0xff]
        %v183 = vld [vmem:[%s176 + $0x8] sm:$0xff]
        %v184 = vld [vmem:[%s1] sm:$0xff]
        %v185 = vld [vmem:[%s1 + $0x8] sm:$0xf]
        %vm188 = vcmask 1040384
        %v189 = vrot.slane %v182, 7
        %v190 = vrot.slane %v183, 7
        %v191 = vsel %vm188, %v189, %v190
        %v194 = vsel %vm188, 0.0, %v189
        %vm195 = vcmask 1046528
        %v196 = vrot.slane %v182, 1
        %v197 = vrot.slane %v183, 1
        %v198 = vsel %vm195, %v196, %v197
        %v200 = vsel %vm195, %v197, 0.0
        %201 = vrot.lane.b32.xlu0 %v182, 4
        %v202 = vpop.permute.xlu0 %201
        %203 = vrot.lane.b32.xlu0 %v183, 4
        %v204 = vpop.permute.xlu0 %203
        %208 = vrot.lane.b32.xlu0 %v198, 8
        %v209 = vpop.permute.xlu0 %208
        %210 = vrot.lane.b32.xlu0 %v200, 8
        %v211 = vpop.permute.xlu0 %210
        %vm214 = vcmask 31744
        %v215 = vsel %vm214, %v194, %v202
        %v216 = vsel %vm214, %v191, %v204
        %vm217 = vcmask 64512
        %v218 = vsel %vm217, %v215, %v209
        %v219 = vsel %vm217, %v216, %v211
        %vm220 = vcmask 97280
        %v222 = vsel %vm220, %v218, 0
        %v225 = vsel %vm220, %v219, 0
        %vm227 = vcmask 1043456
        %v229 = vsel %vm227, %v185, 0
        %231 = vmatpush.msra.mxu0 0.0
        %232 = vmatpush.msra.mxu0 0.0
        %233 = vmatpush.msra.mxu0 0.0
        %234 = vmatpush.msra.mxu0 0.0
        %235 = vmatpush.msra.mxu0 0.0
        %236 = vmatpush.msra.mxu0 0.0
        %237 = vmatpush.msra.mxu0 0.0
        %238 = vmatpush.msra.mxu0 0.0
        %239 = vmatpush.msra.mxu0 0.0
        %240 = vmatpush.msra.mxu0 0.0
        %241 = vmatpush.msra.mxu0 0.0
        %242 = vmatpush.msra.mxu0 0.0
        %243 = vmatpush.msra.mxu0 0.0
        %244 = vmatpush.msra.mxu0 0.0
        %245 = vmatpush.msra.mxu0 %v229
        %246 = vmatpush.msra.mxu0 %v184
        %247 = vmatmul.f32.gmra.mxu0 %v222
        %v248 = vpop.f32.mrf.mxu0
        %v249 = vadd.f32 0.0, %v248
        %250 = vmatmul.f32.gmra.mxu0 %v225
        %v251 = vpop.f32.mrf.mxu0
        %v252 = vadd.f32 0.0, %v251
        %253 = vdwg.mxu0
        %254 = vst.msk [vmem:[%s181] sm:$0xff] %vm217, %v249
        %255 = vst.msk [vmem:[%s181 + $0x8] sm:$0xff] %vm217, %v252
        %v256 = vsel %vm217, %v249, 0.0
        %v257 = vsel %vm217, %v252, 0.0
        %v258 = vadd.f32 %v256, %v257
        %v259 = vrot.slane %v258, 4
        %v260 = vadd.f32 %v258, %v259
        %v261 = vrot.slane %v260, 2
        %v262 = vadd.f32 %v260, %v261
        %v263 = vrot.slane %v262, 1
        %v264 = vadd.f32 %v262, %v263
        %v265 = vmul.f32 %v249, %v249
        %v266 = vmul.f32 %v252, %v252
        %v267 = vsel %vm217, %v265, 0.0
        %v268 = vsel %vm217, %v266, 0.0
        %v269 = vadd.f32 %v267, %v268
        %v270 = vrot.slane %v269, 4
        %v271 = vadd.f32 %v269, %v270
        %v272 = vrot.slane %v271, 2
        %v273 = vadd.f32 %v271, %v272
        %v274 = vrot.slane %v273, 1
        %v275 = vadd.f32 %v273, %v274
        %v276 = vsel %vm188, %v264, %v275
        %vm277 = vcmask 58368
        %278 = vst.msk [vmem:[%s171] sm:$0x3] %vm277, %v276
        %p279 = scmp.lt.s32.totalorder %s18, 1
        %s280 = scalar_select %p279, %s18, 1
        %s281 = smul.addr %s280, 2
        %s282 = smul.addr %s281, 8
        %s283 = scalar_lea.vmem %s2, %s282
        %s284 = sand.u32 %s99, 1
        %s285 = scalar_lea.sflag [#allocation3], %s284
        %s286 = sand.u32 %s99, 1
        %s287 = smul.addr %s286, 2
        %s288 = scalar_lea.vmem [#allocation2], %s287
        // Predicated region
        $region29: #{tpu_custom_call.1} parent=27 // pred_check
          %p289 = pneg %p83
        $region30: #{tpu_custom_call.1} parent=27 // pred_check_branch
          %291 = sbr.rel (%p289) target = $region32
        $region31: #{tpu_custom_call.1} parent=27 // pred_region
          _
        $region32: #{tpu_custom_call.1} parent=27 // pred_fallthru
          _
        // Predicated region
        $region33: #{tpu_custom_call.1} parent=27 // pred_check
          %p292 = pneg %p109
        $region34: #{tpu_custom_call.1} parent=27 // pred_check_branch
          %294 = sbr.rel (%p292) target = $region36
        $region35: #{tpu_custom_call.1} parent=27 // pred_region
          %296 = vsyncadd %s285, 0
          %s297 = smul.addr %s18, 2
          %s298 = scalar_lea.hbm %s3, %s297
          %s300 = sshll.u32 %s288, 4
          %s301 = int_to_ptr.vmem [resolvable:$true] %s300
          %s302 = sshll.u32 %s298, 4
          %s303 = int_to_ptr.hbm [resolvable:$true] %s302
          %305 = dma.vmem_to_hbm [thread:$0]  %s301, 32, %s303, %s285
        $region36: #{tpu_custom_call.1} parent=27 // pred_fallthru
          _
      $region28: #{tpu_custom_call.1} parent=5 // pred_fallthru
        _
      %p306 = scmp.le.s32.totalorder 2, %s13
      // Predicated region
      $region37: #{tpu_custom_call.1} parent=5 // pred_check
        %p307 = pneg %p306
      $region38: #{tpu_custom_call.1} parent=5 // pred_check_branch
        %309 = sbr.rel (%p307) target = $region40
      $region39: #{tpu_custom_call.1} parent=5 // pred_region
        %s310 = ssub.s32 %s13, 2
        // Predicated region
        $region41: #{tpu_custom_call.1} parent=39 // pred_check
          %p311 = pneg %p89
        $region42: #{tpu_custom_call.1} parent=39 // pred_check_branch
          %313 = sbr.rel (%p311) target = $region44
        $region43: #{tpu_custom_call.1} parent=39 // pred_region
          %p314 = scmp.lt.s32.totalorder %s19, 1
          %s315 = scalar_select %p314, %s19, 1
          %s316 = smul.addr %s315, 2
          %s317 = smul.addr %s316, 8
          %s318 = scalar_lea.vmem %s2, %s317
        $region44: #{tpu_custom_call.1} parent=39 // pred_fallthru
          _
        // Predicated region
        $region45: #{tpu_custom_call.1} parent=39 // pred_check
          %p319 = pneg %p115
        $region46: #{tpu_custom_call.1} parent=39 // pred_check_branch
          %321 = sbr.rel (%p319) target = $region48
        $region47: #{tpu_custom_call.1} parent=39 // pred_region
          %s322 = sand.u32 %s100, 1
          %s323 = scalar_lea.sflag [#allocation3], %s322
          %s324 = sand.u32 %s100, 1
          %s325 = smul.addr %s324, 2
          %s326 = scalar_lea.vmem [#allocation2], %s325
          %328 = dma.done %s323, 32
        $region48: #{tpu_custom_call.1} parent=39 // pred_fallthru
          _
      $region40: #{tpu_custom_call.1} parent=5 // pred_fallthru
        _
    $region6: #{tpu_custom_call.1} parent=1 // loop_footer
      %s17 = sadd.s32 1, %s13
    $region7: #{tpu_custom_call.1} parent=1 // loop_footer_branch
      %12 = sbr.rel target = $region3
    $region8: #{tpu_custom_call.1} parent=1 // loop_exit
      _
    %329 = vsyncpa [#allocation3], 1
    %s330 = scalar_lea.sflag [#allocation3], 1
    %331 = vsyncpa %s330, 1

</llo_original>
